<compile_context>
chip_gen: v5e
topology: v5e:2x2
jax: 0.10.0
libtpu: 0.0.40
codegen_flags: <defaults>
</compile_context>

<pallas_src>
import functools

import jax
import jax.numpy as jnp
from jax.experimental import pallas as pl
from jax.experimental.pallas import tpu as pltpu


def _diffusion_gconv_kernel(x0_ref, sup_ref, w_ref, b_ref, out_ref, *,
                            num_supports, max_diffusion_step):
    """One grid step == one batch tile (batch folded into lanes).

    x0_ref : [N, TB*F]        bf16  node features, lane index = (b_in_tile, f)
    sup_ref: [S, N, N]        bf16  dense diffusion supports (grid-invariant)
    w_ref  : [M, TB*F, TB*O]  bf16  block-diagonal (over the batch tile) weights
    b_ref  : [1, TB*O]        f32   bias tiled across the batch tile
    out_ref: [N, TB*O]        f32
    """
    x0_b = x0_ref[...]                       # bf16 [N, TBF]
    x0_f = x0_b.astype(jnp.float32)          # f32 twin for the VALU recurrence

    # m = 0 term: x0 @ W0   (f32 accumulation on the MXU)
    acc = jnp.dot(x0_b, w_ref[0], preferred_element_type=jnp.float32)  # [N, TBO]
    idx = 1

    # Mirrors the PyTorch loop exactly, including the rebinding of x0 inside
    # the inner loop (which leaks into the next support when K >= 2).
    x1_b = x0_b
    x1_f = x0_f
    if max_diffusion_step >= 1:
        for s in range(num_supports):
            sup = sup_ref[s]                 # bf16 [N, N]
            x1_f = jnp.dot(sup, x0_b, preferred_element_type=jnp.float32)
            x1_b = x1_f.astype(x0_b.dtype)
            acc = acc + jnp.dot(x1_b, w_ref[idx],
                                preferred_element_type=jnp.float32)
            idx += 1
            for _ in range(2, max_diffusion_step + 1):
                # x2 = 2 * S @ x1 - x0   (recurrence kept in f32 on the VPU)
                x2_f = 2.0 * jnp.dot(sup, x1_b,
                                     preferred_element_type=jnp.float32) - x0_f
                x2_b = x2_f.astype(x0_b.dtype)
                acc = acc + jnp.dot(x2_b, w_ref[idx],
                                    preferred_element_type=jnp.float32)
                idx += 1
                x1_f, x0_f = x2_f, x1_f
                x1_b, x0_b = x2_b, x1_b

    out_ref[...] = (acc + b_ref[...]).astype(out_ref.dtype)


def _choose_batch_tile(batch, feat):
    """Fold enough batch into the lane axis to fill ~128 lanes of [N, TB*F],
    but keep >= 2 grid steps when the batch allows it (v7x megacore)."""
    tb = max(1, 128 // max(feat, 1))
    if batch >= 2:
        tb = min(tb, -(-batch // 2))        # ceil(batch / 2)
    return max(1, min(tb, batch))


@functools.partial(jax.jit,
                   static_argnames=("num_nodes", "max_diffusion_step",
                                    "output_dim", "batch_tile"))
def diffusion_graph_conv(supports, inputs, state, weight, biases, *,
                         num_nodes, max_diffusion_step, output_dim,
                         batch_tile=None):
    """Pallas wrapper mirroring DiffusionGraphConv.forward."""
    B = inputs.shape[0]
    N = num_nodes
    S = len(supports)
    O = output_dim

    x_in = inputs.reshape(B, N, -1)
    x_st = state.reshape(B, N, -1)
    x0 = jnp.concatenate([x_in, x_st], axis=2)               # [B, N, F]
    F = x0.shape[-1]
    M = S * max_diffusion_step + 1

    TB = batch_tile if batch_tile is not None else _choose_batch_tile(B, F)
    G = -(-B // TB)                                           # number of batch tiles
    B_pad = G * TB
    if B_pad != B:
        x0 = jnp.pad(x0, ((0, B_pad - B), (0, 0), (0, 0)))

    # Fold the batch tile into the lane axis at wrapper level (no in-kernel
    # relayout): [G, N, TB*F] with lane index = t*F + f.
    x0_fold = (x0.reshape(G, TB, N, F)
                 .transpose(0, 2, 1, 3)
                 .reshape(G, N, TB * F)
                 .astype(jnp.bfloat16))

    sup = jnp.stack(supports, axis=0).astype(jnp.bfloat16)    # [S, N, N]

    # PyTorch flattens the feature axis (feature-major, matrix-minor):
    # row index = f * M + m.  Permute to matrix-major [M, F, O], then expand
    # block-diagonally over the batch tile so the folded [N, TB*F] operand can
    # hit the weight directly and the output stays lane-dense at [N, TB*O].
    w_perm = weight.reshape(F, M, O).transpose(1, 0, 2)       # [M, F, O]
    eye_tb = jnp.eye(TB, dtype=w_perm.dtype)
    w_big = jnp.einsum('mfo,tu->mtfuo', w_perm, eye_tb)       # [M, TB, F, TB, O]
    w_big = w_big.reshape(M, TB * F, TB * O).astype(jnp.bfloat16)

    bias = jnp.tile(biases.reshape(1, O).astype(jnp.float32), (1, TB))  # [1, TB*O]

    kernel = functools.partial(_diffusion_gconv_kernel,
                               num_supports=S,
                               max_diffusion_step=max_diffusion_step)

    out = pl.pallas_call(
        kernel,
        out_shape=jax.ShapeDtypeStruct((G, N, TB * O), jnp.float32),
        grid_spec=pltpu.PrefetchScalarGridSpec(
            num_scalar_prefetch=0,
            grid=(G,),
            in_specs=[
                # per-tile folded node features
                pl.BlockSpec((None, N, TB * F), lambda g: (g, 0, 0)),
                # grid-invariant operands (constant index_map -> fetched once)
                pl.BlockSpec((S, N, N), lambda g: (0, 0, 0)),
                pl.BlockSpec((M, TB * F, TB * O), lambda g: (0, 0, 0)),
                pl.BlockSpec((1, TB * O), lambda g: (0, 0)),
            ],
            out_specs=pl.BlockSpec((None, N, TB * O), lambda g: (g, 0, 0)),
        ),
        compiler_params=pltpu.CompilerParams(
            dimension_semantics=("parallel",),
            vmem_limit_bytes=32 * 1024 * 1024),
    )(x0_fold, sup, w_big, bias)

    # Unfold the batch tile from the lane axis and drop any batch padding.
    out = (out.reshape(G, N, TB, O)
              .transpose(0, 2, 1, 3)
              .reshape(B_pad, N, O)[:B])
    return out.reshape(B, N * O)


def _reference(supports, inputs, state, weight, biases,
               num_nodes, max_diffusion_step, output_dim):
    """Direct pure-JAX transcription of the PyTorch forward (incl. the x0
    rebinding inside the Chebyshev loop), for verification."""
    B = inputs.shape[0]
    N = num_nodes
    x_in = inputs.reshape(B, N, -1)
    x_st = state.reshape(B, N, -1)
    x0 = jnp.concatenate([x_in, x_st], axis=2)
    xs = [x0]
    if max_diffusion_step > 0:
        for sup in supports:
            x1 = jnp.einsum('ij,bjf->bif', sup, x0)
            xs.append(x1)
            for _ in range(2, max_diffusion_step + 1):
                x2 = 2.0 * jnp.einsum('ij,bjf->bif', sup, x1) - x0
                xs.append(x2)
                x1, x0 = x2, x1
    x = jnp.stack(xs, axis=1)                       # [B, M, N, F]
    x = jnp.transpose(x, (0, 2, 3, 1))              # [B, N, F, M]
    x = x.reshape(B * N, -1)
    x = x @ weight + biases
    return x.reshape(B, N * output_dim)


def _bf16_round(a):
    return a.astype(jnp.bfloat16).astype(jnp.float32)


if __name__ == "__main__":
    key = jax.random.PRNGKey(0)

    # Small shapes consistent with the module ('dual_random_walk' -> 2 supports).
    B = 4
    N = 16                 # num_nodes
    input_dim = 4
    hid_dim = 8
    max_diffusion_step = 2
    output_dim = 8
    num_supports = 2
    F = input_dim + hid_dim
    num_matrices = num_supports * max_diffusion_step + 1

    k0, k1, k2, k3 = jax.random.split(key, 4)
    inputs = jax.random.normal(k0, (B, N * input_dim), jnp.float32)
    state = jax.random.normal(k1, (B, N * hid_dim), jnp.float32)

    # Deterministic dense random-walk supports (row-normalized).
    # TODO(synk): torch.sparse supports are passed densified; Pallas TPU has no
    # sparse-matmul primitive for the support @ x step.
    adj = jax.random.uniform(k2, (N, N), jnp.float32)
    sup_fwd = adj / jnp.sum(adj, axis=1, keepdims=True)
    sup_bwd = adj.T / jnp.sum(adj.T, axis=1, keepdims=True)
    supports = [sup_fwd, sup_bwd]

    # Parameters: xavier_normal_(gain=1.414) for weight, constant for bias.
    fan_in, fan_out = F * num_matrices, output_dim
    std = 1.414 * (2.0 / (fan_in + fan_out)) ** 0.5
    weight = std * jax.random.normal(k3, (F * num_matrices, output_dim), jnp.float32)
    biases = jnp.full((output_dim,), 0.1, jnp.float32)

    out = diffusion_graph_conv(supports, inputs, state, weight, biases,
                               num_nodes=N,
                               max_diffusion_step=max_diffusion_step,
                               output_dim=output_dim)
    out = jax.block_until_ready(out)

    # Reference on bf16-rounded operands (the kernel feeds the MXU bf16 and
    # accumulates in f32), so the comparison isolates kernel correctness.
    ref = _reference([_bf16_round(s) for s in supports],
                     _bf16_round(inputs), _bf16_round(state),
                     _bf16_round(weight), biases,
                     N, max_diffusion_step, output_dim)

    assert out.shape == (B, N * output_dim)
    assert jnp.allclose(out, ref, atol=3e-2, rtol=3e-2), "mismatch vs reference"

    print("KERNEL_OK")
</pallas_src>

<mosaic_0001>
module attributes {stable_mosaic.version = 11 : i64} {
  func.func @_diffusion_gconv_kernel(%arg0: i32, %arg1: memref<1x16x24xbf16, #tpu.memory_space<vmem>>, %arg2: memref<2x16x16xbf16, #tpu.memory_space<vmem>>, %arg3: memref<5x24x16xbf16, #tpu.memory_space<vmem>>, %arg4: memref<1x16xf32, #tpu.memory_space<vmem>>, %arg5: memref<1x16x16xf32, #tpu.memory_space<vmem>>) attributes {dimension_semantics = [#tpu.dimension_semantics<parallel>], iteration_bounds = array<i64: 2>, scalar_prefetch = 0 : i64, scratch_operands = 0 : i64, tpu.core_type = #tpu.core_type<tc>, window_params = [{transform_indices = @transform_0, window_bounds = array<i64: 1, 16, 24>}, {pipeline_mode = #tpu.pipeline_mode<synchronous>, transform_indices = @transform_1, window_bounds = array<i64: 2, 16, 16>}, {pipeline_mode = #tpu.pipeline_mode<synchronous>, transform_indices = @transform_2, window_bounds = array<i64: 5, 24, 16>}, {pipeline_mode = #tpu.pipeline_mode<synchronous>, transform_indices = @transform_3, window_bounds = array<i64: 1, 16>}, {transform_indices = @transform_4, window_bounds = array<i64: 1, 16, 16>}]} {
    %c0 = arith.constant 0 : index
    %c0_0 = arith.constant 0 : index
    %c0_1 = arith.constant 0 : index
    %0 = vector.load %arg1[%c0, %c0_0, %c0_1] : memref<1x16x24xbf16, #tpu.memory_space<vmem>>, vector<1x16x24xbf16>
    %1 = vector.shape_cast %0 : vector<1x16x24xbf16> to vector<16x24xbf16>
    %2 = arith.extf %1 : vector<16x24xbf16> to vector<16x24xf32>
    %c0_2 = arith.constant 0 : index
    %c0_3 = arith.constant 0 : index
    %c0_4 = arith.constant 0 : index
    %3 = vector.load %arg3[%c0_2, %c0_3, %c0_4] : memref<5x24x16xbf16, #tpu.memory_space<vmem>>, vector<1x24x16xbf16>
    %4 = vector.shape_cast %3 : vector<1x24x16xbf16> to vector<24x16xbf16>
    %cst = arith.constant dense<0.000000e+00> : vector<16x16xf32>
    %5 = tpu.matmul %1, %4, %cst {dimension_numbers = #tpu.dot_dimension_numbers<[1], [0], [0], [1], [0, 0, 1, 1], [], []>} : vector<16x24xbf16>, vector<24x16xbf16>, vector<16x16xf32> -> vector<16x16xf32>
    %c0_5 = arith.constant 0 : index
    %c0_6 = arith.constant 0 : index
    %c0_7 = arith.constant 0 : index
    %6 = vector.load %arg2[%c0_5, %c0_6, %c0_7] : memref<2x16x16xbf16, #tpu.memory_space<vmem>>, vector<1x16x16xbf16>
    %7 = vector.shape_cast %6 : vector<1x16x16xbf16> to vector<16x16xbf16>
    %cst_8 = arith.constant dense<0.000000e+00> : vector<16x24xf32>
    %8 = tpu.matmul %7, %1, %cst_8 {dimension_numbers = #tpu.dot_dimension_numbers<[1], [0], [0], [1], [0, 0, 1, 1], [], []>} : vector<16x16xbf16>, vector<16x24xbf16>, vector<16x24xf32> -> vector<16x24xf32>
    %9 = arith.truncf %8 : vector<16x24xf32> to vector<16x24xbf16>
    %c1 = arith.constant 1 : index
    %c0_9 = arith.constant 0 : index
    %c0_10 = arith.constant 0 : index
    %10 = vector.load %arg3[%c1, %c0_9, %c0_10] : memref<5x24x16xbf16, #tpu.memory_space<vmem>>, vector<1x24x16xbf16>
    %11 = vector.shape_cast %10 : vector<1x24x16xbf16> to vector<24x16xbf16>
    %cst_11 = arith.constant dense<0.000000e+00> : vector<16x16xf32>
    %12 = tpu.matmul %9, %11, %cst_11 {dimension_numbers = #tpu.dot_dimension_numbers<[1], [0], [0], [1], [0, 0, 1, 1], [], []>} : vector<16x24xbf16>, vector<24x16xbf16>, vector<16x16xf32> -> vector<16x16xf32>
    %13 = arith.addf %5, %12 : vector<16x16xf32>
    %cst_12 = arith.constant dense<0.000000e+00> : vector<16x24xf32>
    %14 = tpu.matmul %7, %9, %cst_12 {dimension_numbers = #tpu.dot_dimension_numbers<[1], [0], [0], [1], [0, 0, 1, 1], [], []>} : vector<16x16xbf16>, vector<16x24xbf16>, vector<16x24xf32> -> vector<16x24xf32>
    %cst_13 = arith.constant 2.000000e+00 : f32
    %15 = vector.broadcast %cst_13 : f32 to vector<16x24xf32>
    %16 = arith.mulf %15, %14 : vector<16x24xf32>
    %17 = arith.subf %16, %2 : vector<16x24xf32>
    %18 = arith.truncf %17 : vector<16x24xf32> to vector<16x24xbf16>
    %c2 = arith.constant 2 : index
    %c0_14 = arith.constant 0 : index
    %c0_15 = arith.constant 0 : index
    %19 = vector.load %arg3[%c2, %c0_14, %c0_15] : memref<5x24x16xbf16, #tpu.memory_space<vmem>>, vector<1x24x16xbf16>
    %20 = vector.shape_cast %19 : vector<1x24x16xbf16> to vector<24x16xbf16>
    %cst_16 = arith.constant dense<0.000000e+00> : vector<16x16xf32>
    %21 = tpu.matmul %18, %20, %cst_16 {dimension_numbers = #tpu.dot_dimension_numbers<[1], [0], [0], [1], [0, 0, 1, 1], [], []>} : vector<16x24xbf16>, vector<24x16xbf16>, vector<16x16xf32> -> vector<16x16xf32>
    %22 = arith.addf %13, %21 : vector<16x16xf32>
    %c1_17 = arith.constant 1 : index
    %c0_18 = arith.constant 0 : index
    %c0_19 = arith.constant 0 : index
    %23 = vector.load %arg2[%c1_17, %c0_18, %c0_19] : memref<2x16x16xbf16, #tpu.memory_space<vmem>>, vector<1x16x16xbf16>
    %24 = vector.shape_cast %23 : vector<1x16x16xbf16> to vector<16x16xbf16>
    %cst_20 = arith.constant dense<0.000000e+00> : vector<16x24xf32>
    %25 = tpu.matmul %24, %9, %cst_20 {dimension_numbers = #tpu.dot_dimension_numbers<[1], [0], [0], [1], [0, 0, 1, 1], [], []>} : vector<16x16xbf16>, vector<16x24xbf16>, vector<16x24xf32> -> vector<16x24xf32>
    %26 = arith.truncf %25 : vector<16x24xf32> to vector<16x24xbf16>
    %c3 = arith.constant 3 : index
    %c0_21 = arith.constant 0 : index
    %c0_22 = arith.constant 0 : index
    %27 = vector.load %arg3[%c3, %c0_21, %c0_22] : memref<5x24x16xbf16, #tpu.memory_space<vmem>>, vector<1x24x16xbf16>
    %28 = vector.shape_cast %27 : vector<1x24x16xbf16> to vector<24x16xbf16>
    %cst_23 = arith.constant dense<0.000000e+00> : vector<16x16xf32>
    %29 = tpu.matmul %26, %28, %cst_23 {dimension_numbers = #tpu.dot_dimension_numbers<[1], [0], [0], [1], [0, 0, 1, 1], [], []>} : vector<16x24xbf16>, vector<24x16xbf16>, vector<16x16xf32> -> vector<16x16xf32>
    %30 = arith.addf %22, %29 : vector<16x16xf32>
    %cst_24 = arith.constant dense<0.000000e+00> : vector<16x24xf32>
    %31 = tpu.matmul %24, %26, %cst_24 {dimension_numbers = #tpu.dot_dimension_numbers<[1], [0], [0], [1], [0, 0, 1, 1], [], []>} : vector<16x16xbf16>, vector<16x24xbf16>, vector<16x24xf32> -> vector<16x24xf32>
    %cst_25 = arith.constant 2.000000e+00 : f32
    %32 = vector.broadcast %cst_25 : f32 to vector<16x24xf32>
    %33 = arith.mulf %32, %31 : vector<16x24xf32>
    %34 = arith.subf %33, %8 : vector<16x24xf32>
    %35 = arith.truncf %34 : vector<16x24xf32> to vector<16x24xbf16>
    %c4 = arith.constant 4 : index
    %c0_26 = arith.constant 0 : index
    %c0_27 = arith.constant 0 : index
    %36 = vector.load %arg3[%c4, %c0_26, %c0_27] : memref<5x24x16xbf16, #tpu.memory_space<vmem>>, vector<1x24x16xbf16>
    %37 = vector.shape_cast %36 : vector<1x24x16xbf16> to vector<24x16xbf16>
    %cst_28 = arith.constant dense<0.000000e+00> : vector<16x16xf32>
    %38 = tpu.matmul %35, %37, %cst_28 {dimension_numbers = #tpu.dot_dimension_numbers<[1], [0], [0], [1], [0, 0, 1, 1], [], []>} : vector<16x24xbf16>, vector<24x16xbf16>, vector<16x16xf32> -> vector<16x16xf32>
    %39 = arith.addf %30, %38 : vector<16x16xf32>
    %c0_29 = arith.constant 0 : index
    %c0_30 = arith.constant 0 : index
    %40 = vector.load %arg4[%c0_29, %c0_30] : memref<1x16xf32, #tpu.memory_space<vmem>>, vector<1x16xf32>
    %41 = vector.broadcast %40 : vector<1x16xf32> to vector<16x16xf32>
    %42 = arith.addf %39, %41 : vector<16x16xf32>
    %c0_31 = arith.constant 0 : index
    %c0_32 = arith.constant 0 : index
    %c0_33 = arith.constant 0 : index
    %43 = vector.load %arg5[%c0_31, %c0_32, %c0_33] : memref<1x16x16xf32, #tpu.memory_space<vmem>>, vector<1x16x16xf32>
    %44 = vector.shape_cast %43 : vector<1x16x16xf32> to vector<16x16xf32>
    %45 = vector.shape_cast %42 : vector<16x16xf32> to vector<1x16x16xf32>
    tpu.vector_store %arg5[%c0_31, %c0_32, %c0_33], %45 {strides = array<i32>} : memref<1x16x16xf32, #tpu.memory_space<vmem>>, vector<1x16x16xf32>,
    return
  }
  func.func @transform_0(%arg0: i32) -> (i32, i32, i32) {
    %c0_i32 = arith.constant 0 : i32
    %c0_i32_0 = arith.constant 0 : i32
    %c0_i32_1 = arith.constant 0 : i32
    return %arg0, %c0_i32, %c0_i32_0 : i32, i32, i32
  }
  func.func @transform_1(%arg0: i32) -> (i32, i32, i32) {
    %c0_i32 = arith.constant 0 : i32
    %c0_i32_0 = arith.constant 0 : i32
    %c0_i32_1 = arith.constant 0 : i32
    %c0_i32_2 = arith.constant 0 : i32
    return %c0_i32, %c0_i32_0, %c0_i32_1 : i32, i32, i32
  }
  func.func @transform_2(%arg0: i32) -> (i32, i32, i32) {
    %c0_i32 = arith.constant 0 : i32
    %c0_i32_0 = arith.constant 0 : i32
    %c0_i32_1 = arith.constant 0 : i32
    %c0_i32_2 = arith.constant 0 : i32
    return %c0_i32, %c0_i32_0, %c0_i32_1 : i32, i32, i32
  }
  func.func @transform_3(%arg0: i32) -> (i32, i32) {
    %c0_i32 = arith.constant 0 : i32
    %c0_i32_0 = arith.constant 0 : i32
    %c0_i32_1 = arith.constant 0 : i32
    return %c0_i32, %c0_i32_0 : i32, i32
  }
  func.func @transform_4(%arg0: i32) -> (i32, i32, i32) {
    %c0_i32 = arith.constant 0 : i32
    %c0_i32_0 = arith.constant 0 : i32
    %c0_i32_1 = arith.constant 0 : i32
    return %arg0, %c0_i32, %c0_i32_0 : i32, i32, i32
  }
}

</mosaic_0001>

<llo_original>
// kernel: diffusion_graph_conv.1
$region0: #{diffusion_graph_conv.1}
  #allocation0 [shape = 'u32[]', space=smem, size = 0x4, offset = 0x4, fixed_abs, tag = 'smem constant byte address 0x4 - core index']
  #allocation1 [shape = 'u32[72,128]{1,0:T(1,128)}', space=vmem, size = 0x9000, scoped, tag = 'internal scratch']
  %s0 = inlined_call_operand.vmem [shape: bf16[2,16,24], index: 0, kind: input, shape index: {}]
  %s1 = inlined_call_operand.vmem [shape: bf16[2,16,16], index: 1, kind: input, shape index: {}]
  %s2 = inlined_call_operand.vmem [shape: bf16[5,24,16], index: 2, kind: input, shape index: {}]
  %s3 = inlined_call_operand.vmem [shape: f32[1,16], index: 3, kind: input, shape index: {}]
  %s4 = inlined_call_operand.vmem [shape: f32[2,16,16], index: 4, kind: output, shape index: {}]
  %s5 = sld [smem:[#allocation0]]
  $region49: #{diffusion_graph_conv.1} parent=0
    _
  %s7 = ssub.s32 1, %s5
  %s8 = scalar_select 0, %s7, %s5
  loop: start=0, step=1, limit=4
  $region2: #{diffusion_graph_conv.1} parent=0 // loop_pre_header
    _
  $region3: #{diffusion_graph_conv.1} parent=0 // loop_header
    %s10 = sphi 0, %s14
    %p11 = scmp.ge.s32.totalorder %s10, 4
    %s20 = sphi 0, %s22
    %s23 = sphi 0, %s20
    %s24 = sphi 0, %s23
    %s40 = sphi 0, %s24
    %s44 = sphi 0, %s44
    %s46 = sphi 0, %s44
    %s47 = sphi 0, %s46
    %s61 = sphi 0, %s47
    %s65 = sphi 0, %s65
    %s67 = sphi 0, %s65
    %s68 = sphi 0, %s67
    %s82 = sphi 0, %s68
    %s86 = sphi 0, %s86
    %s88 = sphi 0, %s86
    %s89 = sphi 0, %s88
    %s103 = sphi 0, %s89
    %s109 = sphi 0, %s111
    %s112 = sphi 0, %s109
    %s113 = sphi 0, %s112
    %s129 = sphi 0, %s113
  $region4: #{diffusion_graph_conv.1} parent=0 // loop_header_branch
    %13 = sbr.rel (%p11) target = $region8
  $region5: #{diffusion_graph_conv.1} parent=0 // loop_body
    %s15 = ssub.s32 %s10, 1
    %s16 = ssub.s32 %s10, 2
    %s17 = sadd.s32 %s10, 1
    %s18 = ssub.s32 %s10, %s17
    %p19 = scmp.eq.s32.totalorder %s18, 0
    %s21 = sadd.s32 %s20, 1
    %s22 = scalar_select %p19, %s20, %s21
    %p25 = pneg %p19
    %p26 = scmp.eq.s32.totalorder %s10, 1
    %p27 = por %p25, %p26
    %p28 = scmp.ne.s32.totalorder %s20, %s23
    %p29 = scmp.eq.s32.totalorder %s10, 0
    %p30 = por %p28, %p29
    %p31 = scmp.ne.s32.totalorder %s20, %s23
    %p32 = scmp.eq.s32.totalorder %s15, 1
    %p33 = por %p31, %p32
    %p34 = scmp.ne.s32.totalorder %s23, %s24
    %p35 = scmp.eq.s32.totalorder %s15, 0
    %p36 = por %p34, %p35
    %p37 = scmp.ne.s32.totalorder %s23, %s24
    %p38 = scmp.eq.s32.totalorder %s16, 1
    %p39 = por %p37, %p38
    %p41 = scmp.ne.s32.totalorder %s24, %s40
    %p42 = scmp.eq.s32.totalorder %s16, 0
    %p43 = por %p41, %p42
    %s45 = sadd.s32 %s44, 1
    %p48 = scmp.eq.s32.totalorder %s10, 1
    %p49 = scmp.ne.s32.totalorder %s44, %s46
    %p50 = scmp.eq.s32.totalorder %s10, 0
    %p51 = por %p49, %p50
    %p52 = scmp.ne.s32.totalorder %s44, %s46
    %p53 = scmp.eq.s32.totalorder %s15, 1
    %p54 = por %p52, %p53
    %p55 = scmp.ne.s32.totalorder %s46, %s47
    %p56 = scmp.eq.s32.totalorder %s15, 0
    %p57 = por %p55, %p56
    %p58 = scmp.ne.s32.totalorder %s46, %s47
    %p59 = scmp.eq.s32.totalorder %s16, 1
    %p60 = por %p58, %p59
    %p62 = scmp.ne.s32.totalorder %s47, %s61
    %p63 = scmp.eq.s32.totalorder %s16, 0
    %p64 = por %p62, %p63
    %s66 = sadd.s32 %s65, 1
    %p69 = scmp.eq.s32.totalorder %s10, 1
    %p70 = scmp.ne.s32.totalorder %s65, %s67
    %p71 = scmp.eq.s32.totalorder %s10, 0
    %p72 = por %p70, %p71
    %p73 = scmp.ne.s32.totalorder %s65, %s67
    %p74 = scmp.eq.s32.totalorder %s15, 1
    %p75 = por %p73, %p74
    %p76 = scmp.ne.s32.totalorder %s67, %s68
    %p77 = scmp.eq.s32.totalorder %s15, 0
    %p78 = por %p76, %p77
    %p79 = scmp.ne.s32.totalorder %s67, %s68
    %p80 = scmp.eq.s32.totalorder %s16, 1
    %p81 = por %p79, %p80
    %p83 = scmp.ne.s32.totalorder %s68, %s82
    %p84 = scmp.eq.s32.totalorder %s16, 0
    %p85 = por %p83, %p84
    %s87 = sadd.s32 %s86, 1
    %p90 = scmp.eq.s32.totalorder %s10, 1
    %p91 = scmp.ne.s32.totalorder %s86, %s88
    %p92 = scmp.eq.s32.totalorder %s10, 0
    %p93 = por %p91, %p92
    %p94 = scmp.ne.s32.totalorder %s86, %s88
    %p95 = scmp.eq.s32.totalorder %s15, 1
    %p96 = por %p94, %p95
    %p97 = scmp.ne.s32.totalorder %s88, %s89
    %p98 = scmp.eq.s32.totalorder %s15, 0
    %p99 = por %p97, %p98
    %p100 = scmp.ne.s32.totalorder %s88, %s89
    %p101 = scmp.eq.s32.totalorder %s16, 1
    %p102 = por %p100, %p101
    %p104 = scmp.ne.s32.totalorder %s89, %s103
    %p105 = scmp.eq.s32.totalorder %s16, 0
    %p106 = por %p104, %p105
    %s107 = ssub.s32 %s10, %s17
    %p108 = scmp.eq.s32.totalorder %s107, 0
    %s110 = sadd.s32 %s109, 1
    %s111 = scalar_select %p108, %s109, %s110
    %p114 = pneg %p108
    %p115 = scmp.eq.s32.totalorder %s10, 1
    %p116 = por %p114, %p115
    %p117 = scmp.ne.s32.totalorder %s109, %s112
    %p118 = scmp.eq.s32.totalorder %s10, 0
    %p119 = por %p117, %p118
    %p120 = scmp.ne.s32.totalorder %s109, %s112
    %p121 = scmp.eq.s32.totalorder %s15, 1
    %p122 = por %p120, %p121
    %p123 = scmp.ne.s32.totalorder %s112, %s113
    %p124 = scmp.eq.s32.totalorder %s15, 0
    %p125 = por %p123, %p124
    %p126 = scmp.ne.s32.totalorder %s112, %s113
    %p127 = scmp.eq.s32.totalorder %s16, 1
    %p128 = por %p126, %p127
    %p130 = scmp.ne.s32.totalorder %s113, %s129
    %p131 = scmp.eq.s32.totalorder %s16, 0
    %p132 = por %p130, %p131
    %p133 = scmp.le.s32.totalorder 1, %s10
    %p134 = scmp.lt.s32.totalorder %s10, 3
    %p135 = pnand %p133, %p134
    %p136 = pneg %p135
    // Predicated region
    $region9: #{diffusion_graph_conv.1} parent=5 // pred_check
      _
    $region10: #{diffusion_graph_conv.1} parent=5 // pred_check_branch
      %138 = sbr.rel (%p135) target = $region12
    $region11: #{diffusion_graph_conv.1} parent=5 // pred_region
      %s139 = ssub.s32 %s10, 1
      // Predicated region
      $region13: #{diffusion_graph_conv.1} parent=11 // pred_check
        %p140 = pneg %p57
      $region14: #{diffusion_graph_conv.1} parent=11 // pred_check_branch
        %142 = sbr.rel (%p140) target = $region16
      $region15: #{diffusion_graph_conv.1} parent=11 // pred_region
        _
      $region16: #{diffusion_graph_conv.1} parent=11 // pred_fallthru
        _
      // Predicated region
      $region17: #{diffusion_graph_conv.1} parent=11 // pred_check
        %p143 = pneg %p78
      $region18: #{diffusion_graph_conv.1} parent=11 // pred_check_branch
        %145 = sbr.rel (%p143) target = $region20
      $region19: #{diffusion_graph_conv.1} parent=11 // pred_region
        _
      $region20: #{diffusion_graph_conv.1} parent=11 // pred_fallthru
        _
      // Predicated region
      $region21: #{diffusion_graph_conv.1} parent=11 // pred_check
        %p146 = pneg %p99
      $region22: #{diffusion_graph_conv.1} parent=11 // pred_check_branch
        %148 = sbr.rel (%p146) target = $region24
      $region23: #{diffusion_graph_conv.1} parent=11 // pred_region
        _
      $region24: #{diffusion_graph_conv.1} parent=11 // pred_fallthru
        _
    $region12: #{diffusion_graph_conv.1} parent=5 // pred_fallthru
      _
    %p149 = scmp.lt.s32.totalorder %s10, 2
    // Predicated region
    $region25: #{diffusion_graph_conv.1} parent=5 // pred_check
      %p150 = pneg %p149
    $region26: #{diffusion_graph_conv.1} parent=5 // pred_check_branch
      %152 = sbr.rel (%p150) target = $region28
    $region27: #{diffusion_graph_conv.1} parent=5 // pred_region
      // Predicated region
      $region29: #{diffusion_graph_conv.1} parent=27 // pred_check
        %p153 = pneg %p30
      $region30: #{diffusion_graph_conv.1} parent=27 // pred_check_branch
        %155 = sbr.rel (%p153) target = $region32
      $region31: #{diffusion_graph_conv.1} parent=27 // pred_region
        %p156 = scmp.lt.s32.totalorder %s10, 1
        %s157 = scalar_select %p156, %s10, 1
        %s158 = smul.addr %s157, 2
        %s159 = smul.addr %s158, 4
        %s160 = scalar_lea.vmem %s0, %s159
      $region32: #{diffusion_graph_conv.1} parent=27 // pred_fallthru
        _
    $region28: #{diffusion_graph_conv.1} parent=5 // pred_fallthru
      _
    %p161 = scmp.le.s32.totalorder 1, %s10
    %p162 = scmp.lt.s32.totalorder %s10, 3
    %p163 = pnand %p161, %p162
    %p164 = pneg %p163
    // Predicated region
    $region33: #{diffusion_graph_conv.1} parent=5 // pred_check
      _
    $region34: #{diffusion_graph_conv.1} parent=5 // pred_check_branch
      %166 = sbr.rel (%p163) target = $region36
    $region35: #{diffusion_graph_conv.1} parent=5 // pred_region
      %s167 = ssub.s32 %s10, 1
      %p168 = scmp.lt.s32.totalorder %s15, 1
      %s169 = scalar_select %p168, %s15, 1
      %s170 = smul.addr %s169, 2
      %s171 = smul.addr %s170, 4
      %s172 = scalar_lea.vmem %s0, %s171
      %p173 = pneg %p36
      %p174 = pneg %p33
      %p175 = pneg %p57
      %p176 = pneg %p54
      %p177 = pneg %p78
      %p178 = pneg %p75
      %p179 = pneg %p99
      %p180 = pneg %p96
      %p181 = pneg %p125
      %p182 = pneg %p122
      %p183 = scmp.lt.s32.totalorder %s15, 1
      %s184 = scalar_select %p183, %s15, 1
      %s185 = smul.addr %s184, 2
      %s186 = smul.addr %s185, 8
      %s187 = scalar_lea.vmem %s4, %s186
      %p188 = scmp.lt.s32.totalorder %s15, 1
      %s189 = scalar_select %p188, %s15, 1
      %s190 = smul.addr %s189, 2
      %s191 = smul.addr %s190, 4
      %s192 = scalar_lea.vmem %s0, %s191
      %p193 = scmp.lt.s32.totalorder %s15, 1
      %s194 = scalar_select %p193, %s15, 1
      %s195 = smul.addr %s194, 2
      %s196 = smul.addr %s195, 8
      %s197 = scalar_lea.vmem %s4, %s196
      %v199 = vld [vmem:[%s192] sm:$0xf]
      %v200 = vld [vmem:[%s192 + $0x4] sm:$0xf]
      %v201 = vunpack.c.l.bf16 %v199
      %v202 = vunpack.c.l.bf16 %v200
      %v203 = vld [vmem:[%s2] sm:$0xf]
      %v204 = vld [vmem:[%s2 + $0x4] sm:$0xf]
      %v205 = vld [vmem:[%s2 + $0x8] sm:$0xf]
      %v206 = vld [vmem:[%s1] sm:$0xf]
      %v207 = vld [vmem:[%s1 + $0x4] sm:$0xf]
      %v210 = vunpack.c.l.b16 %v206
      %v211 = vunpack.c.l.b16 %v207
      %v212 = vpack.c.b16 %v211, %v210
      %v215 = vunpack.c.l.b16 %v199
      %v216 = vunpack.c.l.b16 %v200
      %v217 = vpack.c.b16 %v216, %v215
      %vm219 = vcmask 130048
      %v221 = vsel %vm219, %v212, 0
      %223 = vmatpush.bf16.msra.mxu0 0
      %224 = vmatpush.bf16.msra.mxu0 0
      %225 = vmatpush.bf16.msra.mxu0 0
      %226 = vmatpush.bf16.msra.mxu0 0
      %227 = vmatpush.bf16.msra.mxu0 0
      %228 = vmatpush.bf16.msra.mxu0 0
      %229 = vmatpush.bf16.msra.mxu0 0
      %230 = vmatpush.bf16.msra.mxu0 %v217
      %231 = vmatmul.bf16.gmra.mxu0 %v221
      %v232 = vpop.f32.mrf.mxu0
      %v233 = vadd.f32 0.0, %v232
      %v234 = vpop.f32.mrf.mxu0
      %v235 = vadd.f32 0.0, %v234
      %236 = vdwg.mxu0
      %v237 = vpack.c.bf16 %v235, %v233
      %s238 = scalar_lea.vmem %s2, 12
      %v239 = vld [vmem:[%s238] sm:$0xf]
      %v240 = vld [vmem:[%s238 + $0x4] sm:$0xf]
      %v241 = vld [vmem:[%s238 + $0x8] sm:$0xf]
      %v245 = vunpack.c.l.b16 %v239
      %v246 = vunpack.c.l.b16 %v240
      %v247 = vunpack.c.l.b16 %v241
      %v248 = vpack.c.b16 %v246, %v245
      %v249 = vpack.c.b16 %v247, %v247
      %vm251 = vcmask 195584
      %v253 = vsel %vm251, %v237, 0
      %vm255 = vcmask 1043456
      %v257 = vsel %vm255, %v249, 0
      %259 = vmatpush.bf16.msra.mxu0 0
      %260 = vmatpush.bf16.msra.mxu0 0
      %261 = vmatpush.bf16.msra.mxu0 0
      %262 = vmatpush.bf16.msra.mxu0 0
      %263 = vmatpush.bf16.msra.mxu0 0
      %264 = vmatpush.bf16.msra.mxu0 0
      %265 = vmatpush.bf16.msra.mxu0 %v257
      %266 = vmatpush.bf16.msra.mxu0 %v248
      %267 = vmatmul.bf16.gmra.mxu0 %v253
      %v268 = vpop.f32.mrf.mxu0
      %v269 = vadd.f32 0.0, %v268
      %v270 = vpop.f32.mrf.mxu0
      %v271 = vadd.f32 0.0, %v270
      %272 = vdwg.mxu0
      %v276 = vunpack.c.l.b16 %v203
      %v277 = vunpack.c.l.b16 %v204
      %v278 = vunpack.c.l.b16 %v205
      %v279 = vpack.c.b16 %v277, %v276
      %v280 = vpack.c.b16 %v278, %v278
      %v283 = vsel %vm251, %v217, 0
      %v286 = vsel %vm255, %v280, 0
      %288 = vmatpush.bf16.msra.mxu0 0
      %289 = vmatpush.bf16.msra.mxu0 0
      %290 = vmatpush.bf16.msra.mxu0 0
      %291 = vmatpush.bf16.msra.mxu0 0
      %292 = vmatpush.bf16.msra.mxu0 0
      %293 = vmatpush.bf16.msra.mxu0 0
      %294 = vmatpush.bf16.msra.mxu0 %v286
      %295 = vmatpush.bf16.msra.mxu0 %v279
      %296 = vmatmul.bf16.gmra.mxu0 %v283
      %v297 = vpop.f32.mrf.mxu0
      %v298 = vadd.f32 %v269, %v297
      %v299 = vpop.f32.mrf.mxu0
      %v300 = vadd.f32 %v271, %v299
      %301 = vdwg.mxu0
      %302 = vmatpush.bf16.msra.mxu0 0
      %303 = vmatpush.bf16.msra.mxu0 0
      %304 = vmatpush.bf16.msra.mxu0 0
      %305 = vmatpush.bf16.msra.mxu0 0
      %306 = vmatpush.bf16.msra.mxu0 0
      %307 = vmatpush.bf16.msra.mxu0 0
      %308 = vmatpush.bf16.msra.mxu0 0
      %309 = vmatpush.bf16.msra.mxu0 %v237
      %310 = vmatmul.bf16.gmra.mxu0 %v221
      %v311 = vpop.f32.mrf.mxu0
      %v312 = vadd.f32 0.0, %v311
      %v313 = vpop.f32.mrf.mxu0
      %v314 = vadd.f32 0.0, %v313
      %315 = vdwg.mxu0
      %v316 = vmul.f32 %v312, 2.0
      %v317 = vmul.f32 %v314, 2.0
      %v318 = vsub.f32 %v316, %v201
      %v319 = vsub.f32 %v317, %v202
      %v320 = vpack.c.bf16 %v319, %v318
      %s321 = scalar_lea.vmem %s2, 24
      %v322 = vld [vmem:[%s321] sm:$0xf]
      %v323 = vld [vmem:[%s321 + $0x4] sm:$0xf]
      %v324 = vld [vmem:[%s321 + $0x8] sm:$0xf]
      %v328 = vunpack.c.l.b16 %v322
      %v329 = vunpack.c.l.b16 %v323
      %v330 = vunpack.c.l.b16 %v324
      %v331 = vpack.c.b16 %v329, %v328
      %v332 = vpack.c.b16 %v330, %v330
      %v335 = vsel %vm251, %v320, 0
      %v338 = vsel %vm255, %v332, 0
      %340 = vmatpush.bf16.msra.mxu0 0
      %341 = vmatpush.bf16.msra.mxu0 0
      %342 = vmatpush.bf16.msra.mxu0 0
      %343 = vmatpush.bf16.msra.mxu0 0
      %344 = vmatpush.bf16.msra.mxu0 0
      %345 = vmatpush.bf16.msra.mxu0 0
      %346 = vmatpush.bf16.msra.mxu0 %v338
      %347 = vmatpush.bf16.msra.mxu0 %v331
      %348 = vmatmul.bf16.gmra.mxu0 %v335
      %v349 = vpop.f32.mrf.mxu0
      %v350 = vadd.f32 0.0, %v349
      %v351 = vpop.f32.mrf.mxu0
      %v352 = vadd.f32 0.0, %v351
      %353 = vdwg.mxu0
      %v354 = vadd.f32 %v298, %v350
      %v355 = vadd.f32 %v300, %v352
      %s356 = scalar_lea.vmem %s1, 8
      %v357 = vld [vmem:[%s356] sm:$0xf]
      %v358 = vld [vmem:[%s356 + $0x4] sm:$0xf]
      %v361 = vunpack.c.l.b16 %v357
      %v362 = vunpack.c.l.b16 %v358
      %v363 = vpack.c.b16 %v362, %v361
      %v365 = vsel %vm219, %v363, 0
      %367 = vmatpush.bf16.msra.mxu0 0
      %368 = vmatpush.bf16.msra.mxu0 0
      %369 = vmatpush.bf16.msra.mxu0 0
      %370 = vmatpush.bf16.msra.mxu0 0
      %371 = vmatpush.bf16.msra.mxu0 0
      %372 = vmatpush.bf16.msra.mxu0 0
      %373 = vmatpush.bf16.msra.mxu0 0
      %374 = vmatpush.bf16.msra.mxu0 %v237
      %375 = vmatmul.bf16.gmra.mxu0 %v365
      %v376 = vpop.f32.mrf.mxu0
      %v377 = vadd.f32 0.0, %v376
      %v378 = vpop.f32.mrf.mxu0
      %v379 = vadd.f32 0.0, %v378
      %380 = vdwg.mxu0
      %v381 = vpack.c.bf16 %v379, %v377
      %s382 = scalar_lea.vmem %s2, 36
      %v383 = vld [vmem:[%s382] sm:$0xf]
      %v384 = vld [vmem:[%s382 + $0x4] sm:$0xf]
      %v385 = vld [vmem:[%s382 + $0x8] sm:$0xf]
      %v389 = vunpack.c.l.b16 %v383
      %v390 = vunpack.c.l.b16 %v384
      %v391 = vunpack.c.l.b16 %v385
      %v392 = vpack.c.b16 %v390, %v389
      %v393 = vpack.c.b16 %v391, %v391
      %v396 = vsel %vm251, %v381, 0
      %v399 = vsel %vm255, %v393, 0
      %401 = vmatpush.bf16.msra.mxu0 0
      %402 = vmatpush.bf16.msra.mxu0 0
      %403 = vmatpush.bf16.msra.mxu0 0
      %404 = vmatpush.bf16.msra.mxu0 0
      %405 = vmatpush.bf16.msra.mxu0 0
      %406 = vmatpush.bf16.msra.mxu0 0
      %407 = vmatpush.bf16.msra.mxu0 %v399
      %408 = vmatpush.bf16.msra.mxu0 %v392
      %409 = vmatmul.bf16.gmra.mxu0 %v396
      %v410 = vpop.f32.mrf.mxu0
      %v411 = vadd.f32 0.0, %v410
      %v412 = vpop.f32.mrf.mxu0
      %v413 = vadd.f32 0.0, %v412
      %414 = vdwg.mxu0
      %v415 = vadd.f32 %v354, %v411
      %v416 = vadd.f32 %v355, %v413
      %417 = vmatpush.bf16.msra.mxu0 0
      %418 = vmatpush.bf16.msra.mxu0 0
      %419 = vmatpush.bf16.msra.mxu0 0
      %420 = vmatpush.bf16.msra.mxu0 0
      %421 = vmatpush.bf16.msra.mxu0 0
      %422 = vmatpush.bf16.msra.mxu0 0
      %423 = vmatpush.bf16.msra.mxu0 0
      %424 = vmatpush.bf16.msra.mxu0 %v381
      %425 = vmatmul.bf16.gmra.mxu0 %v365
      %v426 = vpop.f32.mrf.mxu0
      %v427 = vadd.f32 0.0, %v426
      %v428 = vpop.f32.mrf.mxu0
      %v429 = vadd.f32 0.0, %v428
      %430 = vdwg.mxu0
      %v431 = vmul.f32 %v427, 2.0
      %v432 = vmul.f32 %v429, 2.0
      %v433 = vsub.f32 %v431, %v233
      %v434 = vsub.f32 %v432, %v235
      %v435 = vpack.c.bf16 %v434, %v433
      %s436 = scalar_lea.vmem %s2, 48
      %v437 = vld [vmem:[%s436] sm:$0xf]
      %v438 = vld [vmem:[%s436 + $0x4] sm:$0xf]
      %v439 = vld [vmem:[%s436 + $0x8] sm:$0xf]
      %v443 = vunpack.c.l.b16 %v437
      %v444 = vunpack.c.l.b16 %v438
      %v445 = vunpack.c.l.b16 %v439
      %v446 = vpack.c.b16 %v444, %v443
      %v447 = vpack.c.b16 %v445, %v445
      %v450 = vsel %vm251, %v435, 0
      %v453 = vsel %vm255, %v447, 0
      %455 = vmatpush.bf16.msra.mxu0 0
      %456 = vmatpush.bf16.msra.mxu0 0
      %457 = vmatpush.bf16.msra.mxu0 0
      %458 = vmatpush.bf16.msra.mxu0 0
      %459 = vmatpush.bf16.msra.mxu0 0
      %460 = vmatpush.bf16.msra.mxu0 0
      %461 = vmatpush.bf16.msra.mxu0 %v453
      %462 = vmatpush.bf16.msra.mxu0 %v446
      %463 = vmatmul.bf16.gmra.mxu0 %v450
      %v464 = vpop.f32.mrf.mxu0
      %v465 = vadd.f32 0.0, %v464
      %v466 = vpop.f32.mrf.mxu0
      %v467 = vadd.f32 0.0, %v466
      %468 = vdwg.mxu0
      %v469 = vadd.f32 %v415, %v465
      %v470 = vadd.f32 %v416, %v467
      %v471 = vld [vmem:[%s3] sm:$0x1]
      %v473 = vperm.slane %v471, 0
      %v475 = vadd.f32 %v469, %v473
      %v476 = vadd.f32 %v470, %v473
      %477 = vst.msk [vmem:[%s197] sm:$0xff] %vm219, %v475
      %478 = vst.msk [vmem:[%s197 + $0x8] sm:$0xff] %vm219, %v476
      %p479 = scmp.lt.s32.totalorder %s15, 1
      %s480 = scalar_select %p479, %s15, 1
      %s481 = smul.addr %s480, 2
      %s482 = smul.addr %s481, 8
      %s483 = scalar_lea.vmem %s4, %s482
      // Predicated region
      $region37: #{diffusion_graph_conv.1} parent=35 // pred_check
        %p484 = pneg %p122
      $region38: #{diffusion_graph_conv.1} parent=35 // pred_check_branch
        %486 = sbr.rel (%p484) target = $region40
      $region39: #{diffusion_graph_conv.1} parent=35 // pred_region
        _
      $region40: #{diffusion_graph_conv.1} parent=35 // pred_fallthru
        _
    $region36: #{diffusion_graph_conv.1} parent=5 // pred_fallthru
      _
    %p487 = scmp.le.s32.totalorder 2, %s10
    // Predicated region
    $region41: #{diffusion_graph_conv.1} parent=5 // pred_check
      %p488 = pneg %p487
    $region42: #{diffusion_graph_conv.1} parent=5 // pred_check_branch
      %490 = sbr.rel (%p488) target = $region44
    $region43: #{diffusion_graph_conv.1} parent=5 // pred_region
      %s491 = ssub.s32 %s10, 2
      // Predicated region
      $region45: #{diffusion_graph_conv.1} parent=43 // pred_check
        %p492 = pneg %p128
      $region46: #{diffusion_graph_conv.1} parent=43 // pred_check_branch
        %494 = sbr.rel (%p492) target = $region48
      $region47: #{diffusion_graph_conv.1} parent=43 // pred_region
        %p495 = scmp.lt.s32.totalorder %s16, 1
        %s496 = scalar_select %p495, %s16, 1
        %s497 = smul.addr %s496, 2
        %s498 = smul.addr %s497, 8
        %s499 = scalar_lea.vmem %s4, %s498
      $region48: #{diffusion_graph_conv.1} parent=43 // pred_fallthru
        _
    $region44: #{diffusion_graph_conv.1} parent=5 // pred_fallthru
      _
  $region6: #{diffusion_graph_conv.1} parent=0 // loop_footer
    %s14 = sadd.s32 1, %s10
  $region7: #{diffusion_graph_conv.1} parent=0 // loop_footer_branch
    %9 = sbr.rel target = $region3
  $region8: #{diffusion_graph_conv.1} parent=0 // loop_exit
    _

</llo_original>
